<compile_context>
chip_gen: v7x
topology: tpu7x:2x2x1
jax: 0.10.0
libtpu: 0.0.40
codegen_flags: <defaults>
</compile_context>

<pallas_src>
import functools

import numpy as np

import jax
import jax.numpy as jnp
from jax.experimental import pallas as pl
from jax.experimental.pallas import tpu as pltpu


LANE = 128      # TPU lane width; feature dim (in_feats) is padded to this
SUBLANE = 8


def _round_up(x, m):
    return (x + m - 1) // m * m


def _trans_embedding_kernel(idx_ref, tbl_ref, w_ref, b_ref, o_ref):
    """One grid step = one tile of `tn` tokens.

    idx_ref: (tn, F)        int32  combined-vocab indices (streamed per tile)
    tbl_ref: (Vp, F*Dp)     bf16   block-structured embedding tables (VMEM-resident)
    w_ref:   (F*Dp, Dp)     bf16   stacked transposed Linear weights (VMEM-resident)
    b_ref:   (1, Dp)        f32    pre-summed biases (VMEM-resident)
    o_ref:   (tn, Dp)       f32    output tile (lane-dense, Dp = 128)
    """
    idx = idx_ref[...]                       # (tn, F) int32
    tn, num_feats = idx.shape
    v_pad = tbl_ref.shape[0]

    # Fused gather: one-hot over the combined (offset) vocabulary.  Offsets are
    # applied in the wrapper, so per-feature index ranges are disjoint and the
    # sum of comparisons is a proper 0/1 matrix for real tokens.
    iota_v = jax.lax.broadcasted_iota(jnp.int32, (tn, v_pad), 1)
    onehot = (idx[:, 0:1] == iota_v).astype(jnp.float32)
    for f in range(1, num_feats):            # F is a small static Python int
        onehot += (idx[:, f:f + 1] == iota_v).astype(jnp.float32)

    # (tn, Vp) @ (Vp, F*Dp) -> gathered embeddings laid out as (tn, F*Dp).
    # The one-hot picks exact bf16 table rows, so the bf16 cast is lossless.
    e_cat = jnp.dot(onehot.astype(jnp.bfloat16), tbl_ref[...],
                    preferred_element_type=jnp.float32).astype(jnp.bfloat16)

    # Single contraction over K = F*Dp replaces the per-feature matmul +
    # accumulate loop of the original module; f32 accumulation on the MXU.
    out = jnp.dot(e_cat, w_ref[...], preferred_element_type=jnp.float32)

    o_ref[...] = out + b_ref[...]            # pre-summed bias, added once


@functools.partial(jax.jit, static_argnames=("tile_n",))
def _trans_embedding_call(idx, t_block, w_stack, b_sum, *, tile_n=1024):
    n, num_feats = idx.shape
    v_pad, fd_pad = t_block.shape
    d_pad = w_stack.shape[1]

    tn = min(tile_n, _round_up(n, SUBLANE))
    n_pad = _round_up(n, tn)
    if n_pad != n:
        idx = jnp.pad(idx, ((0, n_pad - n), (0, 0)))   # pad rows gather row 0; sliced off later

    return pl.pallas_call(
        _trans_embedding_kernel,
        out_shape=jax.ShapeDtypeStruct((n_pad, d_pad), jnp.float32),
        grid_spec=pltpu.PrefetchScalarGridSpec(
            num_scalar_prefetch=0,
            grid=(n_pad // tn,),
            in_specs=[
                pl.BlockSpec((tn, num_feats), lambda i: (i, 0)),    # streamed indices
                pl.BlockSpec((v_pad, fd_pad), lambda i: (0, 0)),    # resident tables
                pl.BlockSpec((fd_pad, d_pad), lambda i: (0, 0)),    # resident weights
                pl.BlockSpec((1, d_pad), lambda i: (0, 0)),         # resident bias
            ],
            out_specs=pl.BlockSpec((tn, d_pad), lambda i: (i, 0)),
        ),
        compiler_params=pltpu.CompilerParams(
            dimension_semantics=("parallel",),          # independent token tiles
            vmem_limit_bytes=32 * 1024 * 1024,          # safe on v5e/v6e/v7x
        ),
    )(idx, t_block, w_stack, b_sum)


def pack_trans_embedding_params(cat_features, emb_tables, weights_t, biases,
                                d_pad=LANE):
    """Pack per-category embedding tables / Linear params into the kernel layout.

    emb_tables: dict col -> (vocab_c, D) f32
    weights_t:  (F, D, D) f32  (Linear weight transposed, so y = x @ w_t + b)
    biases:     (F, D)    f32
    """
    num_feats = len(cat_features)
    d = int(weights_t.shape[-1])
    vocab = [int(emb_tables[c].shape[0]) for c in cat_features]
    offsets = np.concatenate([[0], np.cumsum(vocab)[:-1]]).astype(np.int64)
    v_total = int(sum(vocab))
    v_pad = _round_up(max(v_total, 1), LANE)

    # Block-structured table: rows for feature f live at [off_f, off_f+vocab_f),
    # columns at [f*Dp, f*Dp+D); everything else is zero.
    t_block = np.zeros((v_pad, num_feats * d_pad), np.float32)
    for f, c in enumerate(cat_features):
        t_block[offsets[f]:offsets[f] + vocab[f],
                f * d_pad:f * d_pad + d] = np.asarray(emb_tables[c], np.float32)

    w_stack = np.zeros((num_feats * d_pad, d_pad), np.float32)
    for f in range(num_feats):
        w_stack[f * d_pad:f * d_pad + d, :d] = np.asarray(weights_t[f], np.float32)

    b_sum = np.zeros((1, d_pad), np.float32)
    b_sum[0, :d] = np.asarray(biases, np.float32).sum(axis=0)

    return {
        "cat_features": tuple(cat_features),
        "offsets": {c: int(offsets[f]) for f, c in enumerate(cat_features)},
        "t_block": jnp.asarray(t_block, jnp.bfloat16),
        "w_stack": jnp.asarray(w_stack, jnp.bfloat16),
        "b_sum": jnp.asarray(b_sum, jnp.float32),
        "d_out": d,
    }


def trans_embedding(df, packed, *, tile_n=1024):
    """Eval-mode TransEmbedding.forward: sum_i Linear_i(Embedding_i(df[col_i]))."""
    cols = packed["cat_features"]
    idx = jnp.stack(
        [df[c].astype(jnp.int32) + packed["offsets"][c] for c in cols], axis=1)
    out = _trans_embedding_call(idx, packed["t_block"], packed["w_stack"],
                                packed["b_sum"], tile_n=tile_n)
    return out[:idx.shape[0], :packed["d_out"]]


def _reference(df, cat_features, emb_tables, weights_t, biases):
    """Pure-JAX TransEmbedding.forward (eval-mode dropout), using the same
    bf16-rounded tables/weights the kernel consumes, with f32 accumulation."""
    out = 0.0
    for f, c in enumerate(cat_features):
        tbl = emb_tables[c].astype(jnp.bfloat16).astype(jnp.float32)
        w = weights_t[f].astype(jnp.bfloat16).astype(jnp.float32)
        e = jnp.take(tbl, df[c], axis=0)
        out = out + e @ w + biases[f]
    return out


if __name__ == "__main__":
    cat_features = ["Target", "Type", "Location"]
    vocab_sizes = {"Target": 5, "Type": 7, "Location": 11}
    in_feats = 32     # small stand-in for in_feats=82
    n_tokens = 8      # number of rows in df

    key = jax.random.PRNGKey(0)
    n_cat = len(cat_features)
    keys = jax.random.split(key, 3 * n_cat + 1)

    # Deterministic synthetic parameters (nn.Embedding ~ N(0,1), Linear ~ small).
    emb_tables, w_t_list, b_list = {}, [], []
    for i, c in enumerate(cat_features):
        emb_tables[c] = jax.random.normal(
            keys[i], (vocab_sizes[c], in_feats), dtype=jnp.float32)
        w = jax.random.normal(
            keys[n_cat + i], (in_feats, in_feats), dtype=jnp.float32) / jnp.sqrt(in_feats)
        w_t_list.append(w.T)                      # store transposed: y = x @ w_t + b
        b_list.append(jax.random.normal(
            keys[2 * n_cat + i], (in_feats,), dtype=jnp.float32) * 0.01)
    weights_t = jnp.stack(w_t_list, axis=0)       # (F, D, D)
    biases = jnp.stack(b_list, axis=0)            # (F, D)

    # df: dict of categorical index vectors, one per column.
    idx_keys = jax.random.split(keys[-1], n_cat)
    df = {c: jax.random.randint(idx_keys[i], (n_tokens,), 0, vocab_sizes[c],
                                dtype=jnp.int32)
          for i, c in enumerate(cat_features)}

    packed = pack_trans_embedding_params(cat_features, emb_tables, weights_t, biases)

    out = trans_embedding(df, packed)
    out = jax.block_until_ready(out)

    ref = _reference(df, cat_features, emb_tables, weights_t, biases)
    assert out.shape == (n_tokens, in_feats)
    assert jnp.allclose(out, ref, atol=1e-3, rtol=1e-3), (
        f"mismatch vs reference: max abs diff {float(jnp.max(jnp.abs(out - ref)))}")

    print("KERNEL_OK")
</pallas_src>

<mosaic_0001>
module attributes {stable_mosaic.version = 11 : i64} {
  func.func @_trans_embedding_kernel(%arg0: i32, %arg1: memref<8x3xi32, #tpu.memory_space<vmem>>, %arg2: memref<128x384xbf16, #tpu.memory_space<vmem>>, %arg3: memref<384x128xbf16, #tpu.memory_space<vmem>>, %arg4: memref<1x128xf32, #tpu.memory_space<vmem>>, %arg5: memref<8x128xf32, #tpu.memory_space<vmem>>) attributes {dimension_semantics = [#tpu.dimension_semantics<parallel>], iteration_bounds = array<i64: 1>, scalar_prefetch = 0 : i64, scratch_operands = 0 : i64, tpu.core_type = #tpu.core_type<tc>, window_params = [{transform_indices = @transform_0, window_bounds = array<i64: 8, 3>}, {pipeline_mode = #tpu.pipeline_mode<synchronous>, transform_indices = @transform_1, window_bounds = array<i64: 128, 384>}, {pipeline_mode = #tpu.pipeline_mode<synchronous>, transform_indices = @transform_2, window_bounds = array<i64: 384, 128>}, {pipeline_mode = #tpu.pipeline_mode<synchronous>, transform_indices = @transform_3, window_bounds = array<i64: 1, 128>}, {transform_indices = @transform_4, window_bounds = array<i64: 8, 128>}]} {
    %c0 = arith.constant 0 : index
    %c0_0 = arith.constant 0 : index
    %0 = vector.load %arg1[%c0, %c0_0] : memref<8x3xi32, #tpu.memory_space<vmem>>, vector<8x3xi32>
    %1 = tpu.iota {dimensions = array<i32: 1>} : vector<8x128xi32>
    %2 = vector.extract_strided_slice %0 {offsets = [0, 0], sizes = [8, 1], strides = [1, 1]} : vector<8x3xi32> to vector<8x1xi32>
    %3 = vector.broadcast %2 : vector<8x1xi32> to vector<8x128xi32>
    %4 = arith.cmpi eq, %3, %1 : vector<8x128xi32>
    %5 = arith.extui %4 : vector<8x128xi1> to vector<8x128xi32>
    %6 = arith.sitofp %5 : vector<8x128xi32> to vector<8x128xf32>
    %7 = vector.extract_strided_slice %0 {offsets = [0, 1], sizes = [8, 1], strides = [1, 1]} : vector<8x3xi32> to vector<8x1xi32>
    %8 = vector.broadcast %7 : vector<8x1xi32> to vector<8x128xi32>
    %9 = arith.cmpi eq, %8, %1 : vector<8x128xi32>
    %10 = arith.extui %9 : vector<8x128xi1> to vector<8x128xi32>
    %11 = arith.sitofp %10 : vector<8x128xi32> to vector<8x128xf32>
    %12 = arith.addf %6, %11 : vector<8x128xf32>
    %13 = vector.extract_strided_slice %0 {offsets = [0, 2], sizes = [8, 1], strides = [1, 1]} : vector<8x3xi32> to vector<8x1xi32>
    %14 = vector.broadcast %13 : vector<8x1xi32> to vector<8x128xi32>
    %15 = arith.cmpi eq, %14, %1 : vector<8x128xi32>
    %16 = arith.extui %15 : vector<8x128xi1> to vector<8x128xi32>
    %17 = arith.sitofp %16 : vector<8x128xi32> to vector<8x128xf32>
    %18 = arith.addf %12, %17 : vector<8x128xf32>
    %19 = arith.truncf %18 : vector<8x128xf32> to vector<8x128xbf16>
    %c0_1 = arith.constant 0 : index
    %c0_2 = arith.constant 0 : index
    %20 = vector.load %arg2[%c0_1, %c0_2] : memref<128x384xbf16, #tpu.memory_space<vmem>>, vector<128x384xbf16>
    %cst = arith.constant dense<0.000000e+00> : vector<8x384xf32>
    %21 = tpu.matmul %19, %20, %cst {dimension_numbers = #tpu.dot_dimension_numbers<[1], [0], [0], [1], [0, 0, 1, 1], [], []>} : vector<8x128xbf16>, vector<128x384xbf16>, vector<8x384xf32> -> vector<8x384xf32>
    %22 = arith.truncf %21 : vector<8x384xf32> to vector<8x384xbf16>
    %c0_3 = arith.constant 0 : index
    %c0_4 = arith.constant 0 : index
    %23 = vector.load %arg3[%c0_3, %c0_4] : memref<384x128xbf16, #tpu.memory_space<vmem>>, vector<384x128xbf16>
    %cst_5 = arith.constant dense<0.000000e+00> : vector<8x128xf32>
    %24 = tpu.matmul %22, %23, %cst_5 {dimension_numbers = #tpu.dot_dimension_numbers<[1], [0], [0], [1], [0, 0, 1, 1], [], []>} : vector<8x384xbf16>, vector<384x128xbf16>, vector<8x128xf32> -> vector<8x128xf32>
    %c0_6 = arith.constant 0 : index
    %c0_7 = arith.constant 0 : index
    %25 = vector.load %arg4[%c0_6, %c0_7] : memref<1x128xf32, #tpu.memory_space<vmem>>, vector<1x128xf32>
    %26 = vector.broadcast %25 : vector<1x128xf32> to vector<8x128xf32>
    %27 = arith.addf %24, %26 : vector<8x128xf32>
    %c0_8 = arith.constant 0 : index
    %c0_9 = arith.constant 0 : index
    %28 = vector.load %arg5[%c0_8, %c0_9] : memref<8x128xf32, #tpu.memory_space<vmem>>, vector<8x128xf32>
    tpu.vector_store %arg5[%c0_8, %c0_9], %27 {strides = array<i32>} : memref<8x128xf32, #tpu.memory_space<vmem>>, vector<8x128xf32>,
    return
  }
  func.func @transform_0(%arg0: i32) -> (i32, i32) {
    %c0_i32 = arith.constant 0 : i32
    %c0_i32_0 = arith.constant 0 : i32
    return %arg0, %c0_i32 : i32, i32
  }
  func.func @transform_1(%arg0: i32) -> (i32, i32) {
    %c0_i32 = arith.constant 0 : i32
    %c0_i32_0 = arith.constant 0 : i32
    %c0_i32_1 = arith.constant 0 : i32
    return %c0_i32, %c0_i32_0 : i32, i32
  }
  func.func @transform_2(%arg0: i32) -> (i32, i32) {
    %c0_i32 = arith.constant 0 : i32
    %c0_i32_0 = arith.constant 0 : i32
    %c0_i32_1 = arith.constant 0 : i32
    return %c0_i32, %c0_i32_0 : i32, i32
  }
  func.func @transform_3(%arg0: i32) -> (i32, i32) {
    %c0_i32 = arith.constant 0 : i32
    %c0_i32_0 = arith.constant 0 : i32
    %c0_i32_1 = arith.constant 0 : i32
    return %c0_i32, %c0_i32_0 : i32, i32
  }
  func.func @transform_4(%arg0: i32) -> (i32, i32) {
    %c0_i32 = arith.constant 0 : i32
    %c0_i32_0 = arith.constant 0 : i32
    return %arg0, %c0_i32 : i32, i32
  }
}

</mosaic_0001>

<llo_original>
// kernel: _trans_embedding_call.1
$region0: #{_trans_embedding_call.1}
  #allocation0 [shape = 'u32[]', space=smem, size = 0x4, offset = 0x4, fixed_abs, tag = 'smem constant byte address 0x4 - core index']
  #allocation1 [shape = 'u32[144,128]{1,0:T(1,128)}', space=vmem, size = 0x12000, scoped, tag = 'internal scratch']
  %s0 = inlined_call_operand.vmem [shape: s32[8,3], index: 0, kind: input, shape index: {}]
  %s1 = inlined_call_operand.hbm [shape: bf16[128,384], index: 1, kind: input, shape index: {}]
  %s2 = inlined_call_operand.hbm [shape: bf16[384,128], index: 2, kind: input, shape index: {}]
  %s3 = inlined_call_operand.vmem [shape: f32[1,128], index: 3, kind: input, shape index: {}]
  %s4 = inlined_call_operand.hbm [shape: f32[8,128], index: 4, kind: output, shape index: {}]
  %s5 = sld [smem:[#allocation0]]
  $region34: #{_trans_embedding_call.1} parent=0
    _
  %s7 = ssub.s32 1, %s5
  %s8 = scalar_select 0, %s7, %s5
  $region1: #{_trans_embedding_call.1} parent=0
    #allocation2 [shape = 'u8[98304]{0}', space=vmem, size = 0x18000, scoped, tag = 'input window, operand 1, single buffered']
    #allocation3 [shape = 's32[1]{0}', space=sflag, size = 0x4, scoped, tag = 'scoped memory for _trans_embedding_call.1']
    #allocation4 [shape = 's32[1]{0}', space=sflag, size = 0x4, scoped, tag = 'scoped memory for _trans_embedding_call.1']
    #allocation5 [shape = 'u8[98304]{0}', space=vmem, size = 0x18000, scoped, tag = 'input window, operand 2, single buffered']
    #allocation6 [shape = 's32[1]{0}', space=sflag, size = 0x4, scoped, tag = 'scoped memory for _trans_embedding_call.1']
    #allocation7 [shape = 'u8[4096]{0}', space=vmem, size = 0x1000, scoped, tag = 'output window, operand 0, single buffered']
    %9 = vsyncpa [#allocation3], 0
    %10 = vsyncpa [#allocation6], 0
    %11 = vsyncpa [#allocation4], 0
    // Predicated region
    $region2: #{_trans_embedding_call.1} parent=1 // pred_check
      _
    $region3: #{_trans_embedding_call.1} parent=1 // pred_check_branch
      %13 = sbr.rel (0) target = $region5
    $region4: #{_trans_embedding_call.1} parent=1 // pred_region
      _
    $region5: #{_trans_embedding_call.1} parent=1 // pred_fallthru
      _
    // Predicated region
    $region6: #{_trans_embedding_call.1} parent=1 // pred_check
      _
    $region7: #{_trans_embedding_call.1} parent=1 // pred_check_branch
      %15 = sbr.rel (0) target = $region9
    $region8: #{_trans_embedding_call.1} parent=1 // pred_region
      %s17 = ssub.s32 3072, 3072
      %18 = vsyncadd [#allocation3], %s17
      %s19 = sshll.u32 [#allocation2], 4
      %s20 = int_to_ptr.vmem [resolvable:$true] %s19
      %25 = dma.hbm_to_vmem [thread:$0]  %s1, 3072, %s20, [#allocation3], 192, 192, 12
    $region9: #{_trans_embedding_call.1} parent=1 // pred_fallthru
      _
    // Predicated region
    $region10: #{_trans_embedding_call.1} parent=1 // pred_check
      _
    $region11: #{_trans_embedding_call.1} parent=1 // pred_check_branch
      %27 = sbr.rel (0) target = $region13
    $region12: #{_trans_embedding_call.1} parent=1 // pred_region
      %s29 = ssub.s32 3072, 3072
      %30 = vsyncadd [#allocation6], %s29
      %s31 = sshll.u32 [#allocation5], 4
      %s32 = int_to_ptr.vmem [resolvable:$true] %s31
      %37 = dma.hbm_to_vmem [thread:$0]  %s2, 3072, %s32, [#allocation6], 64, 64, 4
    $region13: #{_trans_embedding_call.1} parent=1 // pred_fallthru
      _
    // Predicated region
    $region14: #{_trans_embedding_call.1} parent=1 // pred_check
      _
    $region15: #{_trans_embedding_call.1} parent=1 // pred_check_branch
      %39 = sbr.rel (0) target = $region17
    $region16: #{_trans_embedding_call.1} parent=1 // pred_region
      _
    $region17: #{_trans_embedding_call.1} parent=1 // pred_fallthru
      _
    // Predicated region
    $region18: #{_trans_embedding_call.1} parent=1 // pred_check
      _
    $region19: #{_trans_embedding_call.1} parent=1 // pred_check_branch
      %41 = sbr.rel (0) target = $region21
    $region20: #{_trans_embedding_call.1} parent=1 // pred_region
      %42 = dma.done [#allocation3], 3072
    $region21: #{_trans_embedding_call.1} parent=1 // pred_fallthru
      _
    // Predicated region
    $region22: #{_trans_embedding_call.1} parent=1 // pred_check
      _
    $region23: #{_trans_embedding_call.1} parent=1 // pred_check_branch
      %44 = sbr.rel (0) target = $region25
    $region24: #{_trans_embedding_call.1} parent=1 // pred_region
      %45 = dma.done [#allocation6], 3072
    $region25: #{_trans_embedding_call.1} parent=1 // pred_fallthru
      _
    %v47 = vld [vmem:[%s0] sm:$0xff]
    %v48 = vlaneseq
    %v49 = vand.u32 %v48, 127
    %50 = vset.pattern.permute.xlu0 0
    %51 = vperm.xlu0 %50, %v47
    %v52 = vpop.permute.xlu0 %51
    %vm53 = vcmp.eq.s32.totalorder %v52, %v49
    %v54 = vsel %vm53, 1, 0
    %v55 = vcvt.s32.f32 %v54
    %56 = vset.pattern.permute.xlu0 1
    %57 = vperm.xlu0 %56, %v47
    %v58 = vpop.permute.xlu0 %57
    %vm59 = vcmp.eq.s32.totalorder %v58, %v49
    %v60 = vsel %vm59, 1, 0
    %v61 = vcvt.s32.f32 %v60
    %v62 = vadd.f32 %v55, %v61
    %63 = vset.pattern.permute.xlu0 2
    %64 = vperm.xlu0 %63, %v47
    %v65 = vpop.permute.xlu0 %64
    %vm66 = vcmp.eq.s32.totalorder %v65, %v49
    %v67 = vsel %vm66, 1, 0
    %v68 = vcvt.s32.f32 %v67
    %v69 = vadd.f32 %v62, %v68
    %v70 = vpack.c.bf16 %v69, %v69
    %v71 = vld [vmem:[#allocation2] sm:$0xff]
    %v72 = vld [vmem:[#allocation2 + $0x8] sm:$0xf]
    %v73 = vld [vmem:[#allocation2 + $0xc] sm:$0xff]
    %v74 = vld [vmem:[#allocation2 + $0x14] sm:$0xf]
    %v75 = vld [vmem:[#allocation2 + $0x18] sm:$0xff]
    %v76 = vld [vmem:[#allocation2 + $0x20] sm:$0xf]
    %v77 = vld [vmem:[#allocation2 + $0x24] sm:$0xff]
    %v78 = vld [vmem:[#allocation2 + $0x2c] sm:$0xf]
    %v79 = vld [vmem:[#allocation2 + $0x30] sm:$0xff]
    %v80 = vld [vmem:[#allocation2 + $0x38] sm:$0xf]
    %v81 = vld [vmem:[#allocation2 + $0x3c] sm:$0xff]
    %v82 = vld [vmem:[#allocation2 + $0x44] sm:$0xf]
    %v83 = vld [vmem:[#allocation2 + $0x48] sm:$0xff]
    %v84 = vld [vmem:[#allocation2 + $0x50] sm:$0xf]
    %v85 = vld [vmem:[#allocation2 + $0x54] sm:$0xff]
    %v86 = vld [vmem:[#allocation2 + $0x5c] sm:$0xf]
    %v87 = vld [vmem:[#allocation2 + $0x60] sm:$0xff]
    %v88 = vld [vmem:[#allocation2 + $0x68] sm:$0xf]
    %v89 = vld [vmem:[#allocation2 + $0x6c] sm:$0xff]
    %v90 = vld [vmem:[#allocation2 + $0x74] sm:$0xf]
    %v91 = vld [vmem:[#allocation2 + $0x78] sm:$0xff]
    %v92 = vld [vmem:[#allocation2 + $0x80] sm:$0xf]
    %v93 = vld [vmem:[#allocation2 + $0x84] sm:$0xff]
    %v94 = vld [vmem:[#allocation2 + $0x8c] sm:$0xf]
    %v95 = vld [vmem:[#allocation2 + $0x90] sm:$0xff]
    %v96 = vld [vmem:[#allocation2 + $0x98] sm:$0xf]
    %v97 = vld [vmem:[#allocation2 + $0x9c] sm:$0xff]
    %v98 = vld [vmem:[#allocation2 + $0xa4] sm:$0xf]
    %v99 = vld [vmem:[#allocation2 + $0xa8] sm:$0xff]
    %v100 = vld [vmem:[#allocation2 + $0xb0] sm:$0xf]
    %v101 = vld [vmem:[#allocation2 + $0xb4] sm:$0xff]
    %v102 = vld [vmem:[#allocation2 + $0xbc] sm:$0xf]
    %v135 = vunpack.c.l.b16 %v71
    %v136 = vunpack.c.h.b16 %v71
    %v137 = vunpack.c.l.b16 %v72
    %v138 = vunpack.c.l.b16 %v73
    %v139 = vunpack.c.h.b16 %v73
    %v140 = vunpack.c.l.b16 %v74
    %v141 = vunpack.c.l.b16 %v75
    %v142 = vunpack.c.h.b16 %v75
    %v143 = vunpack.c.l.b16 %v76
    %v144 = vunpack.c.l.b16 %v77
    %v145 = vunpack.c.h.b16 %v77
    %v146 = vunpack.c.l.b16 %v78
    %v147 = vunpack.c.l.b16 %v79
    %v148 = vunpack.c.h.b16 %v79
    %v149 = vunpack.c.l.b16 %v80
    %v150 = vunpack.c.l.b16 %v81
    %v151 = vunpack.c.h.b16 %v81
    %v152 = vunpack.c.l.b16 %v82
    %v153 = vunpack.c.l.b16 %v83
    %v154 = vunpack.c.h.b16 %v83
    %v155 = vunpack.c.l.b16 %v84
    %v156 = vunpack.c.l.b16 %v85
    %v157 = vunpack.c.h.b16 %v85
    %v158 = vunpack.c.l.b16 %v86
    %v159 = vunpack.c.l.b16 %v87
    %v160 = vunpack.c.h.b16 %v87
    %v161 = vunpack.c.l.b16 %v88
    %v162 = vunpack.c.l.b16 %v89
    %v163 = vunpack.c.h.b16 %v89
    %v164 = vunpack.c.l.b16 %v90
    %v165 = vunpack.c.l.b16 %v91
    %v166 = vunpack.c.h.b16 %v91
    %v167 = vunpack.c.l.b16 %v92
    %v168 = vunpack.c.l.b16 %v93
    %v169 = vunpack.c.h.b16 %v93
    %v170 = vunpack.c.l.b16 %v94
    %v171 = vunpack.c.l.b16 %v95
    %v172 = vunpack.c.h.b16 %v95
    %v173 = vunpack.c.l.b16 %v96
    %v174 = vunpack.c.l.b16 %v97
    %v175 = vunpack.c.h.b16 %v97
    %v176 = vunpack.c.l.b16 %v98
    %v177 = vunpack.c.l.b16 %v99
    %v178 = vunpack.c.h.b16 %v99
    %v179 = vunpack.c.l.b16 %v100
    %v180 = vunpack.c.l.b16 %v101
    %v181 = vunpack.c.h.b16 %v101
    %v182 = vunpack.c.l.b16 %v102
    %v183 = vpack.c.b16 %v138, %v135
    %v184 = vpack.c.b16 %v139, %v136
    %v185 = vpack.c.b16 %v140, %v137
    %v186 = vpack.c.b16 %v144, %v141
    %v187 = vpack.c.b16 %v145, %v142
    %v188 = vpack.c.b16 %v146, %v143
    %v189 = vpack.c.b16 %v150, %v147
    %v190 = vpack.c.b16 %v151, %v148
    %v191 = vpack.c.b16 %v152, %v149
    %v192 = vpack.c.b16 %v156, %v153
    %v193 = vpack.c.b16 %v157, %v154
    %v194 = vpack.c.b16 %v158, %v155
    %v195 = vpack.c.b16 %v162, %v159
    %v196 = vpack.c.b16 %v163, %v160
    %v197 = vpack.c.b16 %v164, %v161
    %v198 = vpack.c.b16 %v168, %v165
    %v199 = vpack.c.b16 %v169, %v166
    %v200 = vpack.c.b16 %v170, %v167
    %v201 = vpack.c.b16 %v174, %v171
    %v202 = vpack.c.b16 %v175, %v172
    %v203 = vpack.c.b16 %v176, %v173
    %v204 = vpack.c.b16 %v180, %v177
    %v205 = vpack.c.b16 %v181, %v178
    %v206 = vpack.c.b16 %v182, %v179
    %231 = vmatprep.subr.bf16.mxu0 %v184
    %232 = vmatpush1.bf16.msra.mxu0 %v183
    %233 = vmatprep.subr.bf16.mxu0 %v187
    %234 = vmatpush1.bf16.msra.mxu0 %v186
    %235 = vmatprep.subr.bf16.mxu0 %v190
    %236 = vmatpush1.bf16.msra.mxu0 %v189
    %237 = vmatprep.subr.bf16.mxu0 %v193
    %238 = vmatpush1.bf16.msra.mxu0 %v192
    %239 = vmatprep.subr.bf16.mxu0 %v196
    %240 = vmatpush1.bf16.msra.mxu0 %v195
    %241 = vmatprep.subr.bf16.mxu0 %v199
    %242 = vmatpush1.bf16.msra.mxu0 %v198
    %243 = vmatprep.subr.bf16.mxu0 %v202
    %244 = vmatpush1.bf16.msra.mxu0 %v201
    %245 = vmatprep.subr.bf16.mxu0 %v205
    %246 = vmatpush1.bf16.msra.mxu0 %v204
    %247 = vmatprep.subr.bf16.mxu0 0
    %248 = vmatpush1.bf16.msra.mxu0 0
    %249 = vmatprep.subr.bf16.mxu0 0
    %250 = vmatpush1.bf16.msra.mxu0 0
    %251 = vmatprep.subr.bf16.mxu0 0
    %252 = vmatpush1.bf16.msra.mxu0 0
    %253 = vmatprep.subr.bf16.mxu0 0
    %254 = vmatpush1.bf16.msra.mxu0 0
    %255 = vmatprep.subr.bf16.mxu0 0
    %256 = vmatpush1.bf16.msra.mxu0 0
    %257 = vmatprep.subr.bf16.mxu0 0
    %258 = vmatpush1.bf16.msra.mxu0 0
    %259 = vmatprep.subr.bf16.mxu0 0
    %260 = vmatpush1.bf16.msra.mxu0 0
    %261 = vmatprep.subr.bf16.mxu0 0
    %262 = vmatpush1.bf16.msra.mxu0 0
    %263 = vmatprep.mubr.bf16.mxu0 0
    %264 = vmatmul.mubr.bf16.gmra.mrb[0].mxu0 %v70
    %v265 = vpop.f32.mrb[0].mxu0
    %v266 = vadd.f32 0.0, %v265
    %v267 = vpop.f32.mrb[0].mxu0
    %v268 = vadd.f32 0.0, %v267
    %v269 = vpop.f32.mrb[0].mxu0
    %v270 = vpop.f32.mrb[0].mxu0
    %271 = vdwg.mxu0
    %272 = vmatprep.subr.bf16.mxu0 0
    %273 = vmatpush1.bf16.msra.mxu0 %v185
    %274 = vmatprep.subr.bf16.mxu0 0
    %275 = vmatpush1.bf16.msra.mxu0 %v188
    %276 = vmatprep.subr.bf16.mxu0 0
    %277 = vmatpush1.bf16.msra.mxu0 %v191
    %278 = vmatprep.subr.bf16.mxu0 0
    %279 = vmatpush1.bf16.msra.mxu0 %v194
    %280 = vmatprep.subr.bf16.mxu0 0
    %281 = vmatpush1.bf16.msra.mxu0 %v197
    %282 = vmatprep.subr.bf16.mxu0 0
    %283 = vmatpush1.bf16.msra.mxu0 %v200
    %284 = vmatprep.subr.bf16.mxu0 0
    %285 = vmatpush1.bf16.msra.mxu0 %v203
    %286 = vmatprep.subr.bf16.mxu0 0
    %287 = vmatpush1.bf16.msra.mxu0 %v206
    %288 = vmatprep.subr.bf16.mxu0 0
    %289 = vmatpush1.bf16.msra.mxu0 0
    %290 = vmatprep.subr.bf16.mxu0 0
    %291 = vmatpush1.bf16.msra.mxu0 0
    %292 = vmatprep.subr.bf16.mxu0 0
    %293 = vmatpush1.bf16.msra.mxu0 0
    %294 = vmatprep.subr.bf16.mxu0 0
    %295 = vmatpush1.bf16.msra.mxu0 0
    %296 = vmatprep.subr.bf16.mxu0 0
    %297 = vmatpush1.bf16.msra.mxu0 0
    %298 = vmatprep.subr.bf16.mxu0 0
    %299 = vmatpush1.bf16.msra.mxu0 0
    %300 = vmatprep.subr.bf16.mxu0 0
    %301 = vmatpush1.bf16.msra.mxu0 0
    %302 = vmatprep.subr.bf16.mxu0 0
    %303 = vmatpush1.bf16.msra.mxu0 0
    %304 = vmatprep.mubr.bf16.mxu0 0
    %305 = vmatmul.mubr.bf16.gmra.mrb[0].mxu0 %v70
    %v306 = vpop.f32.mrb[0].mxu0
    %v307 = vadd.f32 0.0, %v306
    %v308 = vpop.f32.mrb[0].mxu0
    %v309 = vpop.f32.mrb[0].mxu0
    %v310 = vpop.f32.mrb[0].mxu0
    %311 = vdwg.mxu0
    %v312 = vpack.c.bf16 %v266, %v266
    %v313 = vpack.c.bf16 %v268, %v268
    %v314 = vpack.c.bf16 %v307, %v307
    %v315 = vld [vmem:[#allocation5] sm:$0xf]
    %v316 = vld [vmem:[#allocation5 + $0x4] sm:$0xf]
    %v317 = vld [vmem:[#allocation5 + $0x8] sm:$0xf]
    %v318 = vld [vmem:[#allocation5 + $0xc] sm:$0xf]
    %v319 = vld [vmem:[#allocation5 + $0x10] sm:$0xf]
    %v320 = vld [vmem:[#allocation5 + $0x14] sm:$0xf]
    %v321 = vld [vmem:[#allocation5 + $0x18] sm:$0xf]
    %v322 = vld [vmem:[#allocation5 + $0x1c] sm:$0xf]
    %v323 = vld [vmem:[#allocation5 + $0x20] sm:$0xf]
    %v324 = vld [vmem:[#allocation5 + $0x24] sm:$0xf]
    %v325 = vld [vmem:[#allocation5 + $0x28] sm:$0xf]
    %v326 = vld [vmem:[#allocation5 + $0x2c] sm:$0xf]
    %v327 = vld [vmem:[#allocation5 + $0x30] sm:$0xf]
    %v328 = vld [vmem:[#allocation5 + $0x34] sm:$0xf]
    %v329 = vld [vmem:[#allocation5 + $0x38] sm:$0xf]
    %v330 = vld [vmem:[#allocation5 + $0x3c] sm:$0xf]
    %v331 = vld [vmem:[#allocation5 + $0x40] sm:$0xf]
    %v332 = vld [vmem:[#allocation5 + $0x44] sm:$0xf]
    %v333 = vld [vmem:[#allocation5 + $0x48] sm:$0xf]
    %v334 = vld [vmem:[#allocation5 + $0x4c] sm:$0xf]
    %v335 = vld [vmem:[#allocation5 + $0x50] sm:$0xf]
    %v336 = vld [vmem:[#allocation5 + $0x54] sm:$0xf]
    %v337 = vld [vmem:[#allocation5 + $0x58] sm:$0xf]
    %v338 = vld [vmem:[#allocation5 + $0x5c] sm:$0xf]
    %v339 = vld [vmem:[#allocation5 + $0x60] sm:$0xf]
    %v340 = vld [vmem:[#allocation5 + $0x64] sm:$0xf]
    %v341 = vld [vmem:[#allocation5 + $0x68] sm:$0xf]
    %v342 = vld [vmem:[#allocation5 + $0x6c] sm:$0xf]
    %v343 = vld [vmem:[#allocation5 + $0x70] sm:$0xf]
    %v344 = vld [vmem:[#allocation5 + $0x74] sm:$0xf]
    %v345 = vld [vmem:[#allocation5 + $0x78] sm:$0xf]
    %v346 = vld [vmem:[#allocation5 + $0x7c] sm:$0xf]
    %v347 = vld [vmem:[#allocation5 + $0x80] sm:$0xf]
    %v348 = vld [vmem:[#allocation5 + $0x84] sm:$0xf]
    %v349 = vld [vmem:[#allocation5 + $0x88] sm:$0xf]
    %v350 = vld [vmem:[#allocation5 + $0x8c] sm:$0xf]
    %v351 = vld [vmem:[#allocation5 + $0x90] sm:$0xf]
    %v352 = vld [vmem:[#allocation5 + $0x94] sm:$0xf]
    %v353 = vld [vmem:[#allocation5 + $0x98] sm:$0xf]
    %v354 = vld [vmem:[#allocation5 + $0x9c] sm:$0xf]
    %v355 = vld [vmem:[#allocation5 + $0xa0] sm:$0xf]
    %v356 = vld [vmem:[#allocation5 + $0xa4] sm:$0xf]
    %v357 = vld [vmem:[#allocation5 + $0xa8] sm:$0xf]
    %v358 = vld [vmem:[#allocation5 + $0xac] sm:$0xf]
    %v359 = vld [vmem:[#allocation5 + $0xb0] sm:$0xf]
    %v360 = vld [vmem:[#allocation5 + $0xb4] sm:$0xf]
    %v361 = vld [vmem:[#allocation5 + $0xb8] sm:$0xf]
    %v362 = vld [vmem:[#allocation5 + $0xbc] sm:$0xf]
    %v363 = vld [vmem:[%s3] sm:$0x1]
    %v365 = vlaneseq
    %v366 = vshrl.u32 %v365, 7
    %v367 = vsub.s32 0, %v366
    %v368 = vrot.slane %v363, %v367
    %v418 = vunpack.c.l.b16 %v315
    %v419 = vunpack.c.l.b16 %v316
    %v420 = vunpack.c.l.b16 %v317
    %v421 = vunpack.c.l.b16 %v318
    %v422 = vunpack.c.l.b16 %v319
    %v423 = vunpack.c.l.b16 %v320
    %v424 = vunpack.c.l.b16 %v321
    %v425 = vunpack.c.l.b16 %v322
    %v426 = vunpack.c.l.b16 %v323
    %v427 = vunpack.c.l.b16 %v324
    %v428 = vunpack.c.l.b16 %v325
    %v429 = vunpack.c.l.b16 %v326
    %v430 = vunpack.c.l.b16 %v327
    %v431 = vunpack.c.l.b16 %v328
    %v432 = vunpack.c.l.b16 %v329
    %v433 = vunpack.c.l.b16 %v330
    %v434 = vunpack.c.l.b16 %v331
    %v435 = vunpack.c.l.b16 %v332
    %v436 = vunpack.c.l.b16 %v333
    %v437 = vunpack.c.l.b16 %v334
    %v438 = vunpack.c.l.b16 %v335
    %v439 = vunpack.c.l.b16 %v336
    %v440 = vunpack.c.l.b16 %v337
    %v441 = vunpack.c.l.b16 %v338
    %v442 = vunpack.c.l.b16 %v339
    %v443 = vunpack.c.l.b16 %v340
    %v444 = vunpack.c.l.b16 %v341
    %v445 = vunpack.c.l.b16 %v342
    %v446 = vunpack.c.l.b16 %v343
    %v447 = vunpack.c.l.b16 %v344
    %v448 = vunpack.c.l.b16 %v345
    %v449 = vunpack.c.l.b16 %v346
    %v450 = vunpack.c.l.b16 %v347
    %v451 = vunpack.c.l.b16 %v348
    %v452 = vunpack.c.l.b16 %v349
    %v453 = vunpack.c.l.b16 %v350
    %v454 = vunpack.c.l.b16 %v351
    %v455 = vunpack.c.l.b16 %v352
    %v456 = vunpack.c.l.b16 %v353
    %v457 = vunpack.c.l.b16 %v354
    %v458 = vunpack.c.l.b16 %v355
    %v459 = vunpack.c.l.b16 %v356
    %v460 = vunpack.c.l.b16 %v357
    %v461 = vunpack.c.l.b16 %v358
    %v462 = vunpack.c.l.b16 %v359
    %v463 = vunpack.c.l.b16 %v360
    %v464 = vunpack.c.l.b16 %v361
    %v465 = vunpack.c.l.b16 %v362
    %v466 = vpack.c.b16 %v419, %v418
    %v467 = vpack.c.b16 %v421, %v420
    %v468 = vpack.c.b16 %v423, %v422
    %v469 = vpack.c.b16 %v425, %v424
    %v470 = vpack.c.b16 %v427, %v426
    %v471 = vpack.c.b16 %v429, %v428
    %v472 = vpack.c.b16 %v431, %v430
    %v473 = vpack.c.b16 %v433, %v432
    %v474 = vpack.c.b16 %v435, %v434
    %v475 = vpack.c.b16 %v437, %v436
    %v476 = vpack.c.b16 %v439, %v438
    %v477 = vpack.c.b16 %v441, %v440
    %v478 = vpack.c.b16 %v443, %v442
    %v479 = vpack.c.b16 %v445, %v444
    %v480 = vpack.c.b16 %v447, %v446
    %v481 = vpack.c.b16 %v449, %v448
    %v482 = vpack.c.b16 %v451, %v450
    %v483 = vpack.c.b16 %v453, %v452
    %v484 = vpack.c.b16 %v455, %v454
    %v485 = vpack.c.b16 %v457, %v456
    %v486 = vpack.c.b16 %v459, %v458
    %v487 = vpack.c.b16 %v461, %v460
    %v488 = vpack.c.b16 %v463, %v462
    %v489 = vpack.c.b16 %v465, %v464
    %514 = vmatprep.subr.bf16.mxu0 0
    %515 = vmatpush1.bf16.msra.mxu0 %v466
    %516 = vmatprep.subr.bf16.mxu0 0
    %517 = vmatpush1.bf16.msra.mxu0 %v467
    %518 = vmatprep.subr.bf16.mxu0 0
    %519 = vmatpush1.bf16.msra.mxu0 %v468
    %520 = vmatprep.subr.bf16.mxu0 0
    %521 = vmatpush1.bf16.msra.mxu0 %v469
    %522 = vmatprep.subr.bf16.mxu0 0
    %523 = vmatpush1.bf16.msra.mxu0 %v470
    %524 = vmatprep.subr.bf16.mxu0 0
    %525 = vmatpush1.bf16.msra.mxu0 %v471
    %526 = vmatprep.subr.bf16.mxu0 0
    %527 = vmatpush1.bf16.msra.mxu0 %v472
    %528 = vmatprep.subr.bf16.mxu0 0
    %529 = vmatpush1.bf16.msra.mxu0 %v473
    %530 = vmatprep.subr.bf16.mxu0 0
    %531 = vmatpush1.bf16.msra.mxu0 %v474
    %532 = vmatprep.subr.bf16.mxu0 0
    %533 = vmatpush1.bf16.msra.mxu0 %v475
    %534 = vmatprep.subr.bf16.mxu0 0
    %535 = vmatpush1.bf16.msra.mxu0 %v476
    %536 = vmatprep.subr.bf16.mxu0 0
    %537 = vmatpush1.bf16.msra.mxu0 %v477
    %538 = vmatprep.subr.bf16.mxu0 0
    %539 = vmatpush1.bf16.msra.mxu0 %v478
    %540 = vmatprep.subr.bf16.mxu0 0
    %541 = vmatpush1.bf16.msra.mxu0 %v479
    %542 = vmatprep.subr.bf16.mxu0 0
    %543 = vmatpush1.bf16.msra.mxu0 %v480
    %544 = vmatprep.subr.bf16.mxu0 0
    %545 = vmatpush1.bf16.msra.mxu0 %v481
    %546 = vmatprep.mubr.bf16.mxu0 %v313
    %547 = vmatmul.mubr.bf16.gmra.mrb[0].mxu0 %v312
    %v548 = vpop.f32.mrb[0].mxu0
    %v549 = vadd.f32 %v368, %v548
    %v550 = vpop.f32.mrb[0].mxu0
    %v551 = vpop.f32.mrb[0].mxu0
    %v552 = vpop.f32.mrb[0].mxu0
    %553 = vdwg.mxu0
    %554 = vmatprep.subr.bf16.mxu0 0
    %555 = vmatpush1.bf16.msra.mxu0 %v482
    %556 = vmatprep.subr.bf16.mxu0 0
    %557 = vmatpush1.bf16.msra.mxu0 %v483
    %558 = vmatprep.subr.bf16.mxu0 0
    %559 = vmatpush1.bf16.msra.mxu0 %v484
    %560 = vmatprep.subr.bf16.mxu0 0
    %561 = vmatpush1.bf16.msra.mxu0 %v485
    %562 = vmatprep.subr.bf16.mxu0 0
    %563 = vmatpush1.bf16.msra.mxu0 %v486
    %564 = vmatprep.subr.bf16.mxu0 0
    %565 = vmatpush1.bf16.msra.mxu0 %v487
    %566 = vmatprep.subr.bf16.mxu0 0
    %567 = vmatpush1.bf16.msra.mxu0 %v488
    %568 = vmatprep.subr.bf16.mxu0 0
    %569 = vmatpush1.bf16.msra.mxu0 %v489
    %570 = vmatprep.subr.bf16.mxu0 0
    %571 = vmatpush1.bf16.msra.mxu0 0
    %572 = vmatprep.subr.bf16.mxu0 0
    %573 = vmatpush1.bf16.msra.mxu0 0
    %574 = vmatprep.subr.bf16.mxu0 0
    %575 = vmatpush1.bf16.msra.mxu0 0
    %576 = vmatprep.subr.bf16.mxu0 0
    %577 = vmatpush1.bf16.msra.mxu0 0
    %578 = vmatprep.subr.bf16.mxu0 0
    %579 = vmatpush1.bf16.msra.mxu0 0
    %580 = vmatprep.subr.bf16.mxu0 0
    %581 = vmatpush1.bf16.msra.mxu0 0
    %582 = vmatprep.subr.bf16.mxu0 0
    %583 = vmatpush1.bf16.msra.mxu0 0
    %584 = vmatprep.subr.bf16.mxu0 0
    %585 = vmatpush1.bf16.msra.mxu0 0
    %586 = vmatprep.mubr.bf16.mxu0 0
    %587 = vmatmul.mubr.bf16.gmra.mrb[0].mxu0 %v314
    %v588 = vpop.f32.mrb[0].mxu0
    %v589 = vadd.f32 %v549, %v588
    %v590 = vpop.f32.mrb[0].mxu0
    %v591 = vpop.f32.mrb[0].mxu0
    %v592 = vpop.f32.mrb[0].mxu0
    %593 = vdwg.mxu0
    %594 = vst [vmem:[#allocation7] sm:$0xff] %v589
    // Predicated region
    $region26: #{_trans_embedding_call.1} parent=1 // pred_check
      _
    $region27: #{_trans_embedding_call.1} parent=1 // pred_check_branch
      %596 = sbr.rel (0) target = $region29
    $region28: #{_trans_embedding_call.1} parent=1 // pred_region
      %s598 = ssub.s32 128, 128
      %599 = vsyncadd [#allocation4], %s598
      %s601 = sshll.u32 [#allocation7], 4
      %s602 = int_to_ptr.vmem [resolvable:$true] %s601
      %604 = dma.vmem_to_hbm [thread:$0]  %s602, 128, %s4, [#allocation4]
    $region29: #{_trans_embedding_call.1} parent=1 // pred_fallthru
      _
    // Predicated region
    $region30: #{_trans_embedding_call.1} parent=1 // pred_check
      _
    $region31: #{_trans_embedding_call.1} parent=1 // pred_check_branch
      %606 = sbr.rel (0) target = $region33
    $region32: #{_trans_embedding_call.1} parent=1 // pred_region
      %607 = dma.done [#allocation4], 128
    $region33: #{_trans_embedding_call.1} parent=1 // pred_fallthru
      _
    %608 = vsyncpa [#allocation3], 1
    %609 = vsyncpa [#allocation6], 1
    %610 = vsyncpa [#allocation4], 1

</llo_original>
